<compile_context>
chip_gen: v6e
topology: v6e:2x2x1
jax: 0.10.0
libtpu: 0.0.40
codegen_flags: <defaults>
</compile_context>

<pallas_src>
import functools
import math

import jax
import jax.numpy as jnp
from jax.experimental import pallas as pl
from jax.experimental.pallas import tpu as pltpu

_LN_EPS = 1e-6


def _layer_norm(y, gamma, beta, eps=_LN_EPS):
    # Biased variance, matching PyTorch nn.LayerNorm.
    mu = jnp.mean(y, axis=-1, keepdims=True)
    var = jnp.mean((y - mu) ** 2, axis=-1, keepdims=True)
    return (y - mu) * jax.lax.rsqrt(var + eps) * gamma + beta


@functools.lru_cache(maxsize=None)
def _single_buffering_supported() -> bool:
    """Probe pl.Buffered(1) (single-buffered constant blocks); fall back if absent."""
    try:
        def _copy(x_ref, o_ref):
            o_ref[...] = x_ref[...]

        x = jnp.zeros((8, 128), jnp.float32)
        out = pl.pallas_call(
            _copy,
            out_shape=jax.ShapeDtypeStruct((8, 128), jnp.float32),
            grid=(1,),
            in_specs=[pl.BlockSpec((8, 128), lambda i: (0, 0),
                                   pipeline_mode=pl.Buffered(1))],
            out_specs=pl.BlockSpec((8, 128), lambda i: (0, 0)),
        )(x)
        jax.block_until_ready(out)
        return True
    except Exception:  # any failure -> default (double) buffering
        return False


def _const_spec(shape):
    """BlockSpec for a block whose index never changes; single-buffer when supported."""
    nd = len(shape)
    index_map = lambda *_: (0,) * nd
    if _single_buffering_supported():
        return pl.BlockSpec(shape, index_map, pipeline_mode=pl.Buffered(1))
    return pl.BlockSpec(shape, index_map)


def _vmem_limit_bytes() -> int:
    try:
        cap = int(pltpu.get_tpu_info().vmem_capacity_bytes)
    except Exception:
        cap = 64 * 1024 * 1024
    # ~75% of physical VMEM: 96 MiB on v5e/v6e (128 MiB parts), 48 MiB on v7x (64 MiB).
    return min(96 * 1024 * 1024, (cap * 3) // 4)


def _tile(dim: int, target: int, align: int) -> int:
    """Largest `align`-aligned divisor of `dim` that is <= target (else the full dim)."""
    if dim <= target:
        return dim
    t = (target // align) * align
    while t >= align:
        if dim % t == 0:
            return t
        t -= align
    return dim


# --------------------------- kernel 1: fused QKV projection ---------------------------
def qkv_proj_kernel(x_ref, wqkv_ref, bqkv_ref, q_ref, k_ref, v_ref, *, num_heads):
    x = x_ref[0]                                     # (Ts, E) matmul dtype
    E = x.shape[-1]
    H = num_heads
    Dh = E // H
    scale = 1.0 / math.sqrt(Dh)

    qkv = jnp.dot(x, wqkv_ref[...], preferred_element_type=jnp.float32)
    qkv = qkv + bqkv_ref[0].astype(jnp.float32)
    q = qkv[:, :E] * scale                           # fold 1/sqrt(Dh) into q
    k = qkv[:, E:2 * E]
    v = qkv[:, 2 * E:]

    # Head split happens exactly once, here: the attention kernel consumes a
    # ready-made head-major (H, Tq, Dh) layout and never stacks/concats per KV step.
    for h in range(H):
        sl = slice(h * Dh, (h + 1) * Dh)
        q_ref[0, h] = q[:, sl].astype(q_ref.dtype)
        k_ref[0, h] = k[:, sl].astype(k_ref.dtype)
        v_ref[0, h] = v[:, sl].astype(v_ref.dtype)


# ------------- kernel 2: flash attention + out-proj + residual + LayerNorm1 -----------
def attn_kernel(x_ref, q_ref, k_ref, v_ref, wo_ref, bo_ref, g1_ref, b1_ref,
                o_ref, m_ref, l_ref, acc_ref, *, matmul_dtype):
    ki = pl.program_id(2)

    @pl.when(ki == 0)
    def _():
        m_ref[...] = jnp.full(m_ref.shape, -jnp.inf, jnp.float32)
        l_ref[...] = jnp.zeros(l_ref.shape, jnp.float32)
        acc_ref[...] = jnp.zeros(acc_ref.shape, jnp.float32)

    q = q_ref[0]                                     # (H, Tq, Dh), pre-scaled, bf16
    k = k_ref[0]                                     # (H, Tk, Dh)
    v = v_ref[0]                                     # (H, Tk, Dh)

    s = jnp.einsum("hqd,hkd->hqk", q, k,
                   preferred_element_type=jnp.float32)            # (H, Tq, Tk) f32
    m_prev = m_ref[...]
    m_new = jnp.maximum(m_prev, jnp.max(s, axis=-1, keepdims=True))
    alpha = jnp.exp(m_prev - m_new)
    p = jnp.exp(s - m_new)
    l_ref[...] = alpha * l_ref[...] + jnp.sum(p, axis=-1, keepdims=True)
    acc_ref[...] = alpha * acc_ref[...] + jnp.einsum(
        "hqk,hkd->hqd", p.astype(matmul_dtype), v,
        preferred_element_type=jnp.float32)
    m_ref[...] = m_new

    @pl.when(ki == pl.num_programs(2) - 1)
    def _():
        # Deferred softmax normalization: scale the (H,Tq,Dh) accumulator, not the
        # (H,Tq,Tk) probabilities; EUP reciprocal instead of a VPU divide.
        ctx = acc_ref[...] * pl.reciprocal(l_ref[...], approx=True)
        # Per-head output projection against wo pre-reshaped to (H, Dh, E);
        # summing over heads replaces the concat.  Attention-weight dropout and
        # dropout1 are inference identities.
        attn = jnp.einsum("hqd,hde->hqe", ctx.astype(matmul_dtype), wo_ref[...],
                          preferred_element_type=jnp.float32)
        attn = jnp.sum(attn, axis=0) + bo_ref[0].astype(jnp.float32)
        y = x_ref[0].astype(jnp.float32) + attn
        o_ref[0] = _layer_norm(y, g1_ref[0].astype(jnp.float32),
                               b1_ref[0].astype(jnp.float32)).astype(o_ref.dtype)


# ------------- kernel 3: FFN (streamed hidden chunks) + residual + LayerNorm2 ---------
def ffn_kernel(u_ref, w1_ref, b1_ref, w2_ref, b2_ref, g2_ref, be2_ref,
               o_ref, acc_ref, *, matmul_dtype):
    fi = pl.program_id(2)

    @pl.when(fi == 0)
    def _():
        acc_ref[...] = jnp.zeros(acc_ref.shape, jnp.float32)

    u = u_ref[0]                                     # (Ts, E) matmul dtype
    h = jnp.dot(u, w1_ref[...], preferred_element_type=jnp.float32)
    h = jnp.maximum(h + b1_ref[0].astype(jnp.float32), 0.0)
    acc_ref[...] += jnp.dot(h.astype(matmul_dtype), w2_ref[...],
                            preferred_element_type=jnp.float32)

    @pl.when(fi == pl.num_programs(2) - 1)
    def _():
        ffn = acc_ref[...] + b2_ref[0].astype(jnp.float32)        # dropout2: identity
        y = u_ref[0].astype(jnp.float32) + ffn
        o_ref[0] = _layer_norm(y, g2_ref[0].astype(jnp.float32),
                               be2_ref[0].astype(jnp.float32)).astype(o_ref.dtype)


# ------------------------------------ wrapper -----------------------------------------
def transformer_block(x, params, *, num_heads, batch_first=False,
                      matmul_dtype=jnp.bfloat16,
                      row_tile=256, kv_tile=256, ffn_tile=512):
    """x: (S, B, E) seq-first (PyTorch nn.MultiheadAttention default), or (B, S, E)
    if batch_first=True (skips the edge transposes)."""
    out_dtype = x.dtype
    x_bse = x if batch_first else jnp.transpose(x, (1, 0, 2))     # (B, S, E)
    B, S, E = x_bse.shape
    H = num_heads
    assert E % H == 0
    Dh = E // H
    F = params["w1"].shape[0]

    # One-time layout / dtype prep (HBM-side, done by XLA; no in-kernel transposes).
    x_bse = x_bse.astype(matmul_dtype)
    wqkv_t = params["wqkv"].T.astype(matmul_dtype)                 # (E, 3E)
    wo_h = params["wo"].T.reshape(H, Dh, E).astype(matmul_dtype)   # (H, Dh, E)
    w1_t = params["w1"].T.astype(matmul_dtype)                     # (E, F)
    w2_t = params["w2"].T.astype(matmul_dtype)                     # (F, E)

    Ts = _tile(S, row_tile, 8)      # row / query tile
    Tk = _tile(S, kv_tile, 8)       # KV tile for the online softmax
    Tf = _tile(F, ffn_tile, 128)    # streamed FFN hidden-dim chunk

    vmem_limit = _vmem_limit_bytes()
    n_row, n_kv, n_f = S // Ts, S // Tk, F // Tf

    # ---- 1) fused QKV projection, head-major bf16 outputs ----
    qkv_cost = pl.CostEstimate(
        flops=int(2 * B * S * E * 3 * E),
        transcendentals=0,
        bytes_accessed=int(2 * B * S * E + 2 * E * 3 * E + 4 * 3 * E + 3 * 2 * B * S * E))
    q, k, v = pl.pallas_call(
        functools.partial(qkv_proj_kernel, num_heads=H),
        out_shape=tuple(jax.ShapeDtypeStruct((B, H, S, Dh), matmul_dtype)
                        for _ in range(3)),
        grid=(B, n_row),
        in_specs=[
            pl.BlockSpec((1, Ts, E), lambda b, i: (b, i, 0)),      # x rows
            _const_spec((E, 3 * E)),                               # wqkv (pre-transposed)
            _const_spec((1, 3 * E)),                               # bqkv
        ],
        out_specs=tuple(pl.BlockSpec((1, H, Ts, Dh), lambda b, i: (b, 0, i, 0))
                        for _ in range(3)),
        compiler_params=pltpu.CompilerParams(
            dimension_semantics=("parallel", "parallel"),
            vmem_limit_bytes=vmem_limit),
        cost_estimate=qkv_cost,
    )(x_bse, wqkv_t, params["bqkv"])

    # ---- 2) flash attention + output projection + residual + LN1 ----
    attn_cost = pl.CostEstimate(
        flops=int(4 * B * H * S * S * Dh + 2 * B * S * E * E),
        transcendentals=int(B * H * S * S),
        bytes_accessed=int(2 * B * S * E * (2 + 3 * n_row) + 2 * E * E + 2 * B * S * E))
    out1 = pl.pallas_call(
        functools.partial(attn_kernel, matmul_dtype=matmul_dtype),
        out_shape=jax.ShapeDtypeStruct((B, S, E), matmul_dtype),
        grid=(B, n_row, n_kv),
        in_specs=[
            pl.BlockSpec((1, Ts, E), lambda b, qi, ki: (b, qi, 0)),        # x (residual)
            pl.BlockSpec((1, H, Ts, Dh), lambda b, qi, ki: (b, 0, qi, 0)),  # q tile
            pl.BlockSpec((1, H, Tk, Dh), lambda b, qi, ki: (b, 0, ki, 0)),  # k tile
            pl.BlockSpec((1, H, Tk, Dh), lambda b, qi, ki: (b, 0, ki, 0)),  # v tile
            _const_spec((H, Dh, E)),                                        # wo (H,Dh,E)
            _const_spec((1, E)),                                            # bo
            _const_spec((1, E)), _const_spec((1, E)),                       # ln1 g/b
        ],
        out_specs=pl.BlockSpec((1, Ts, E), lambda b, qi, ki: (b, qi, 0)),
        scratch_shapes=[
            pltpu.VMEM((H, Ts, 1), jnp.float32),    # running max
            pltpu.VMEM((H, Ts, 1), jnp.float32),    # running denominator
            pltpu.VMEM((H, Ts, Dh), jnp.float32),   # context accumulator
        ],
        compiler_params=pltpu.CompilerParams(
            dimension_semantics=("parallel", "parallel", "arbitrary"),
            vmem_limit_bytes=vmem_limit),
        cost_estimate=attn_cost,
    )(x_bse, q, k, v, wo_h, params["bo"], params["ln1_g"], params["ln1_b"])

    # ---- 3) FFN with streamed w1/w2 chunks + residual + LN2 ----
    ffn_cost = pl.CostEstimate(
        flops=int(4 * B * S * E * F),
        transcendentals=0,
        bytes_accessed=int(4 * B * S * E + 2 * 2 * E * F * max(n_row, 1) + 4 * B * S * E))
    out2 = pl.pallas_call(
        functools.partial(ffn_kernel, matmul_dtype=matmul_dtype),
        out_shape=jax.ShapeDtypeStruct((B, S, E), out_dtype),
        grid=(B, n_row, n_f),
        in_specs=[
            pl.BlockSpec((1, Ts, E), lambda b, i, fi: (b, i, 0)),   # out1 rows
            pl.BlockSpec((E, Tf), lambda b, i, fi: (0, fi)),        # w1 chunk (streamed)
            pl.BlockSpec((1, Tf), lambda b, i, fi: (0, fi)),        # b1 chunk
            pl.BlockSpec((Tf, E), lambda b, i, fi: (fi, 0)),        # w2 chunk (streamed)
            _const_spec((1, E)),                                    # b2
            _const_spec((1, E)), _const_spec((1, E)),               # ln2 g/b
        ],
        out_specs=pl.BlockSpec((1, Ts, E), lambda b, i, fi: (b, i, 0)),
        scratch_shapes=[pltpu.VMEM((Ts, E), jnp.float32)],
        compiler_params=pltpu.CompilerParams(
            dimension_semantics=("parallel", "parallel", "arbitrary"),
            vmem_limit_bytes=vmem_limit),
        cost_estimate=ffn_cost,
    )(out1, w1_t, params["b1"], w2_t, params["b2"],
      params["ln2_g"], params["ln2_b"])

    return out2 if batch_first else jnp.transpose(out2, (1, 0, 2))


# ------------------------- plain-JAX reference (f32) -------------------------
def transformer_block_ref(x_sbe, params, *, num_heads):
    x = jnp.transpose(x_sbe, (1, 0, 2)).astype(jnp.float32)   # (B, S, E)
    B, S, E = x.shape
    Dh = E // num_heads
    wqkv, bqkv = params["wqkv"], params["bqkv"][0]
    q = x @ wqkv[:E].T + bqkv[:E]
    k = x @ wqkv[E:2 * E].T + bqkv[E:2 * E]
    v = x @ wqkv[2 * E:].T + bqkv[2 * E:]

    def split(t):  # (B, S, E) -> (B, H, S, Dh)
        return jnp.transpose(t.reshape(B, S, num_heads, Dh), (0, 2, 1, 3))

    qh, kh, vh = split(q), split(k), split(v)
    s = jnp.einsum("bhqd,bhkd->bhqk", qh, kh) / math.sqrt(Dh)
    p = jax.nn.softmax(s, axis=-1)
    a = jnp.einsum("bhqk,bhkd->bhqd", p, vh)
    a = jnp.transpose(a, (0, 2, 1, 3)).reshape(B, S, E)
    attn_out = a @ params["wo"].T + params["bo"][0]

    def ln(y, g, b):
        mu = jnp.mean(y, -1, keepdims=True)
        var = jnp.mean((y - mu) ** 2, -1, keepdims=True)
        return (y - mu) * jax.lax.rsqrt(var + 1e-6) * g[0] + b[0]

    out1 = ln(x + attn_out, params["ln1_g"], params["ln1_b"])
    h1 = jnp.maximum(out1 @ params["w1"].T + params["b1"][0], 0.0)
    ffn_out = h1 @ params["w2"].T + params["b2"][0]
    out2 = ln(out1 + ffn_out, params["ln2_g"], params["ln2_b"])
    return jnp.transpose(out2, (1, 0, 2))


def init_params(key, embed_dim, ff_dim):
    ks = jax.random.split(key, 6)
    sc = 0.05
    return {
        "wqkv": sc * jax.random.normal(ks[0], (3 * embed_dim, embed_dim), jnp.float32),
        "bqkv": sc * jax.random.normal(ks[1], (1, 3 * embed_dim), jnp.float32),
        "wo":   sc * jax.random.normal(ks[2], (embed_dim, embed_dim), jnp.float32),
        "bo":   jnp.zeros((1, embed_dim), jnp.float32),
        "w1":   sc * jax.random.normal(ks[3], (ff_dim, embed_dim), jnp.float32),
        "b1":   sc * jax.random.normal(ks[4], (1, ff_dim), jnp.float32),
        "w2":   sc * jax.random.normal(ks[5], (embed_dim, ff_dim), jnp.float32),
        "b2":   jnp.zeros((1, embed_dim), jnp.float32),
        "ln1_g": jnp.ones((1, embed_dim), jnp.float32),
        "ln1_b": jnp.zeros((1, embed_dim), jnp.float32),
        "ln2_g": jnp.ones((1, embed_dim), jnp.float32),
        "ln2_b": jnp.zeros((1, embed_dim), jnp.float32),
    }


if __name__ == "__main__":
    SEQ, BATCH, EMBED, HEADS, FF = 8, 2, 32, 4, 64

    key = jax.random.PRNGKey(0)
    kx, kp = jax.random.split(key)
    x = jax.random.normal(kx, (SEQ, BATCH, EMBED), jnp.float32)  # (S, B, E) MHA layout
    params = init_params(kp, EMBED, FF)

    out = transformer_block(x, params, num_heads=HEADS)
    out = jax.block_until_ready(out)

    ref = transformer_block_ref(x, params, num_heads=HEADS)
    assert out.shape == (SEQ, BATCH, EMBED)
    # bf16 matmul operands / bf16 boundary activations with f32 accumulation.
    err = float(jnp.max(jnp.abs(out.astype(jnp.float32) - ref)))
    assert err < 5e-2, f"mismatch vs reference: max abs err {err}"

    print("KERNEL_OK")
</pallas_src>

<mosaic_0001>
module attributes {stable_mosaic.version = 11 : i64} {
  func.func @_copy(%arg0: i32, %arg1: memref<8x128xf32, #tpu.memory_space<vmem>>, %arg2: memref<8x128xf32, #tpu.memory_space<vmem>>) attributes {dimension_semantics = [#tpu.dimension_semantics<arbitrary>], iteration_bounds = array<i64: 1>, scalar_prefetch = 0 : i64, scratch_operands = 0 : i64, tpu.core_type = #tpu.core_type<tc>, window_params = [{pipeline_mode = #tpu.pipeline_mode<synchronous>, transform_indices = @transform_0, window_bounds = array<i64: 8, 128>}, {pipeline_mode = #tpu.pipeline_mode<synchronous>, transform_indices = @transform_1, window_bounds = array<i64: 8, 128>}]} {
    %c0 = arith.constant 0 : index
    %c0_0 = arith.constant 0 : index
    %0 = vector.load %arg1[%c0, %c0_0] : memref<8x128xf32, #tpu.memory_space<vmem>>, vector<8x128xf32>
    %c0_1 = arith.constant 0 : index
    %c0_2 = arith.constant 0 : index
    %1 = vector.load %arg2[%c0_1, %c0_2] : memref<8x128xf32, #tpu.memory_space<vmem>>, vector<8x128xf32>
    tpu.vector_store %arg2[%c0_1, %c0_2], %0 {strides = array<i32>} : memref<8x128xf32, #tpu.memory_space<vmem>>, vector<8x128xf32>,
    return
  }
  func.func @transform_0(%arg0: i32) -> (i32, i32) {
    %c0_i32 = arith.constant 0 : i32
    %c0_i32_0 = arith.constant 0 : i32
    %c0_i32_1 = arith.constant 0 : i32
    return %c0_i32, %c0_i32_0 : i32, i32
  }
  func.func @transform_1(%arg0: i32) -> (i32, i32) {
    %c0_i32 = arith.constant 0 : i32
    %c0_i32_0 = arith.constant 0 : i32
    %c0_i32_1 = arith.constant 0 : i32
    return %c0_i32, %c0_i32_0 : i32, i32
  }
}

module attributes {stable_mosaic.version = 11 : i64} {
  func.func @qkv_proj_kernel(%arg0: i32, %arg1: i32, %arg2: memref<1x8x32xbf16, #tpu.memory_space<vmem>>, %arg3: memref<32x96xbf16, #tpu.memory_space<vmem>>, %arg4: memref<1x96xf32, #tpu.memory_space<vmem>>, %arg5: memref<1x4x8x8xbf16, #tpu.memory_space<vmem>>, %arg6: memref<1x4x8x8xbf16, #tpu.memory_space<vmem>>, %arg7: memref<1x4x8x8xbf16, #tpu.memory_space<vmem>>) attributes {dimension_semantics = [#tpu.dimension_semantics<parallel>, #tpu.dimension_semantics<parallel>], iteration_bounds = array<i64: 2, 1>, scalar_prefetch = 0 : i64, scratch_operands = 0 : i64, tpu.core_type = #tpu.core_type<tc>, window_params = [{transform_indices = @transform_0, window_bounds = array<i64: 1, 8, 32>}, {pipeline_mode = #tpu.pipeline_mode<synchronous>, transform_indices = @transform_1, window_bounds = array<i64: 32, 96>}, {pipeline_mode = #tpu.pipeline_mode<synchronous>, transform_indices = @transform_2, window_bounds = array<i64: 1, 96>}, {transform_indices = @transform_3, window_bounds = array<i64: 1, 4, 8, 8>}, {transform_indices = @transform_4, window_bounds = array<i64: 1, 4, 8, 8>}, {transform_indices = @transform_5, window_bounds = array<i64: 1, 4, 8, 8>}]} {
    %c0 = arith.constant 0 : index
    %c0_0 = arith.constant 0 : index
    %c0_1 = arith.constant 0 : index
    %0 = vector.load %arg2[%c0, %c0_0, %c0_1] : memref<1x8x32xbf16, #tpu.memory_space<vmem>>, vector<1x8x32xbf16>
    %1 = vector.shape_cast %0 : vector<1x8x32xbf16> to vector<8x32xbf16>
    %c0_2 = arith.constant 0 : index
    %c0_3 = arith.constant 0 : index
    %2 = vector.load %arg3[%c0_2, %c0_3] : memref<32x96xbf16, #tpu.memory_space<vmem>>, vector<32x96xbf16>
    %cst = arith.constant dense<0.000000e+00> : vector<8x96xf32>
    %3 = tpu.matmul %1, %2, %cst {dimension_numbers = #tpu.dot_dimension_numbers<[1], [0], [0], [1], [0, 0, 1, 1], [], []>} : vector<8x32xbf16>, vector<32x96xbf16>, vector<8x96xf32> -> vector<8x96xf32>
    %c0_4 = arith.constant 0 : index
    %c0_5 = arith.constant 0 : index
    %4 = vector.load %arg4[%c0_4, %c0_5] : memref<1x96xf32, #tpu.memory_space<vmem>>, vector<1x96xf32>
    %5 = vector.shape_cast %4 : vector<1x96xf32> to vector<96xf32>
    %6 = vector.shape_cast %5 : vector<96xf32> to vector<1x96xf32>
    %7 = vector.broadcast %6 : vector<1x96xf32> to vector<8x96xf32>
    %8 = arith.addf %3, %7 : vector<8x96xf32>
    %9 = vector.extract_strided_slice %8 {offsets = [0, 0], sizes = [8, 32], strides = [1, 1]} : vector<8x96xf32> to vector<8x32xf32>
    %cst_6 = arith.constant 0.353553385 : f32
    %10 = vector.broadcast %cst_6 : f32 to vector<8x32xf32>
    %11 = arith.mulf %9, %10 : vector<8x32xf32>
    %12 = vector.extract_strided_slice %8 {offsets = [0, 32], sizes = [8, 32], strides = [1, 1]} : vector<8x96xf32> to vector<8x32xf32>
    %13 = vector.extract_strided_slice %8 {offsets = [0, 64], sizes = [8, 32], strides = [1, 1]} : vector<8x96xf32> to vector<8x32xf32>
    %14 = vector.extract_strided_slice %11 {offsets = [0, 0], sizes = [8, 8], strides = [1, 1]} : vector<8x32xf32> to vector<8x8xf32>
    %15 = arith.truncf %14 : vector<8x8xf32> to vector<8x8xbf16>
    %c0_7 = arith.constant 0 : index
    %c0_8 = arith.constant 0 : index
    %c0_9 = arith.constant 0 : index
    %c0_10 = arith.constant 0 : index
    %16 = vector.load %arg5[%c0_7, %c0_8, %c0_9, %c0_10] : memref<1x4x8x8xbf16, #tpu.memory_space<vmem>>, vector<1x1x8x8xbf16>
    %17 = vector.shape_cast %16 : vector<1x1x8x8xbf16> to vector<8x8xbf16>
    %18 = vector.shape_cast %15 : vector<8x8xbf16> to vector<1x1x8x8xbf16>
    tpu.vector_store %arg5[%c0_7, %c0_8, %c0_9, %c0_10], %18 {strides = array<i32>} : memref<1x4x8x8xbf16, #tpu.memory_space<vmem>>, vector<1x1x8x8xbf16>,
    %19 = vector.extract_strided_slice %12 {offsets = [0, 0], sizes = [8, 8], strides = [1, 1]} : vector<8x32xf32> to vector<8x8xf32>
    %20 = arith.truncf %19 : vector<8x8xf32> to vector<8x8xbf16>
    %c0_11 = arith.constant 0 : index
    %c0_12 = arith.constant 0 : index
    %c0_13 = arith.constant 0 : index
    %c0_14 = arith.constant 0 : index
    %21 = vector.load %arg6[%c0_11, %c0_12, %c0_13, %c0_14] : memref<1x4x8x8xbf16, #tpu.memory_space<vmem>>, vector<1x1x8x8xbf16>
    %22 = vector.shape_cast %21 : vector<1x1x8x8xbf16> to vector<8x8xbf16>
    %23 = vector.shape_cast %20 : vector<8x8xbf16> to vector<1x1x8x8xbf16>
    tpu.vector_store %arg6[%c0_11, %c0_12, %c0_13, %c0_14], %23 {strides = array<i32>} : memref<1x4x8x8xbf16, #tpu.memory_space<vmem>>, vector<1x1x8x8xbf16>,
    %24 = vector.extract_strided_slice %13 {offsets = [0, 0], sizes = [8, 8], strides = [1, 1]} : vector<8x32xf32> to vector<8x8xf32>
    %25 = arith.truncf %24 : vector<8x8xf32> to vector<8x8xbf16>
    %c0_15 = arith.constant 0 : index
    %c0_16 = arith.constant 0 : index
    %c0_17 = arith.constant 0 : index
    %c0_18 = arith.constant 0 : index
    %26 = vector.load %arg7[%c0_15, %c0_16, %c0_17, %c0_18] : memref<1x4x8x8xbf16, #tpu.memory_space<vmem>>, vector<1x1x8x8xbf16>
    %27 = vector.shape_cast %26 : vector<1x1x8x8xbf16> to vector<8x8xbf16>
    %28 = vector.shape_cast %25 : vector<8x8xbf16> to vector<1x1x8x8xbf16>
    tpu.vector_store %arg7[%c0_15, %c0_16, %c0_17, %c0_18], %28 {strides = array<i32>} : memref<1x4x8x8xbf16, #tpu.memory_space<vmem>>, vector<1x1x8x8xbf16>,
    %29 = vector.extract_strided_slice %11 {offsets = [0, 8], sizes = [8, 8], strides = [1, 1]} : vector<8x32xf32> to vector<8x8xf32>
    %30 = arith.truncf %29 : vector<8x8xf32> to vector<8x8xbf16>
    %c0_19 = arith.constant 0 : index
    %c1 = arith.constant 1 : index
    %c0_20 = arith.constant 0 : index
    %c0_21 = arith.constant 0 : index
    %31 = vector.load %arg5[%c0_19, %c1, %c0_20, %c0_21] : memref<1x4x8x8xbf16, #tpu.memory_space<vmem>>, vector<1x1x8x8xbf16>
    %32 = vector.shape_cast %31 : vector<1x1x8x8xbf16> to vector<8x8xbf16>
    %33 = vector.shape_cast %30 : vector<8x8xbf16> to vector<1x1x8x8xbf16>
    tpu.vector_store %arg5[%c0_19, %c1, %c0_20, %c0_21], %33 {strides = array<i32>} : memref<1x4x8x8xbf16, #tpu.memory_space<vmem>>, vector<1x1x8x8xbf16>,
    %34 = vector.extract_strided_slice %12 {offsets = [0, 8], sizes = [8, 8], strides = [1, 1]} : vector<8x32xf32> to vector<8x8xf32>
    %35 = arith.truncf %34 : vector<8x8xf32> to vector<8x8xbf16>
    %c0_22 = arith.constant 0 : index
    %c1_23 = arith.constant 1 : index
    %c0_24 = arith.constant 0 : index
    %c0_25 = arith.constant 0 : index
    %36 = vector.load %arg6[%c0_22, %c1_23, %c0_24, %c0_25] : memref<1x4x8x8xbf16, #tpu.memory_space<vmem>>, vector<1x1x8x8xbf16>
    %37 = vector.shape_cast %36 : vector<1x1x8x8xbf16> to vector<8x8xbf16>
    %38 = vector.shape_cast %35 : vector<8x8xbf16> to vector<1x1x8x8xbf16>
    tpu.vector_store %arg6[%c0_22, %c1_23, %c0_24, %c0_25], %38 {strides = array<i32>} : memref<1x4x8x8xbf16, #tpu.memory_space<vmem>>, vector<1x1x8x8xbf16>,
    %39 = vector.extract_strided_slice %13 {offsets = [0, 8], sizes = [8, 8], strides = [1, 1]} : vector<8x32xf32> to vector<8x8xf32>
    %40 = arith.truncf %39 : vector<8x8xf32> to vector<8x8xbf16>
    %c0_26 = arith.constant 0 : index
    %c1_27 = arith.constant 1 : index
    %c0_28 = arith.constant 0 : index
    %c0_29 = arith.constant 0 : index
    %41 = vector.load %arg7[%c0_26, %c1_27, %c0_28, %c0_29] : memref<1x4x8x8xbf16, #tpu.memory_space<vmem>>, vector<1x1x8x8xbf16>
    %42 = vector.shape_cast %41 : vector<1x1x8x8xbf16> to vector<8x8xbf16>
    %43 = vector.shape_cast %40 : vector<8x8xbf16> to vector<1x1x8x8xbf16>
    tpu.vector_store %arg7[%c0_26, %c1_27, %c0_28, %c0_29], %43 {strides = array<i32>} : memref<1x4x8x8xbf16, #tpu.memory_space<vmem>>, vector<1x1x8x8xbf16>,
    %44 = vector.extract_strided_slice %11 {offsets = [0, 16], sizes = [8, 8], strides = [1, 1]} : vector<8x32xf32> to vector<8x8xf32>
    %45 = arith.truncf %44 : vector<8x8xf32> to vector<8x8xbf16>
    %c0_30 = arith.constant 0 : index
    %c2 = arith.constant 2 : index
    %c0_31 = arith.constant 0 : index
    %c0_32 = arith.constant 0 : index
    %46 = vector.load %arg5[%c0_30, %c2, %c0_31, %c0_32] : memref<1x4x8x8xbf16, #tpu.memory_space<vmem>>, vector<1x1x8x8xbf16>
    %47 = vector.shape_cast %46 : vector<1x1x8x8xbf16> to vector<8x8xbf16>
    %48 = vector.shape_cast %45 : vector<8x8xbf16> to vector<1x1x8x8xbf16>
    tpu.vector_store %arg5[%c0_30, %c2, %c0_31, %c0_32], %48 {strides = array<i32>} : memref<1x4x8x8xbf16, #tpu.memory_space<vmem>>, vector<1x1x8x8xbf16>,
    %49 = vector.extract_strided_slice %12 {offsets = [0, 16], sizes = [8, 8], strides = [1, 1]} : vector<8x32xf32> to vector<8x8xf32>
    %50 = arith.truncf %49 : vector<8x8xf32> to vector<8x8xbf16>
    %c0_33 = arith.constant 0 : index
    %c2_34 = arith.constant 2 : index
    %c0_35 = arith.constant 0 : index
    %c0_36 = arith.constant 0 : index
    %51 = vector.load %arg6[%c0_33, %c2_34, %c0_35, %c0_36] : memref<1x4x8x8xbf16, #tpu.memory_space<vmem>>, vector<1x1x8x8xbf16>
    %52 = vector.shape_cast %51 : vector<1x1x8x8xbf16> to vector<8x8xbf16>
    %53 = vector.shape_cast %50 : vector<8x8xbf16> to vector<1x1x8x8xbf16>
    tpu.vector_store %arg6[%c0_33, %c2_34, %c0_35, %c0_36], %53 {strides = array<i32>} : memref<1x4x8x8xbf16, #tpu.memory_space<vmem>>, vector<1x1x8x8xbf16>,
    %54 = vector.extract_strided_slice %13 {offsets = [0, 16], sizes = [8, 8], strides = [1, 1]} : vector<8x32xf32> to vector<8x8xf32>
    %55 = arith.truncf %54 : vector<8x8xf32> to vector<8x8xbf16>
    %c0_37 = arith.constant 0 : index
    %c2_38 = arith.constant 2 : index
    %c0_39 = arith.constant 0 : index
    %c0_40 = arith.constant 0 : index
    %56 = vector.load %arg7[%c0_37, %c2_38, %c0_39, %c0_40] : memref<1x4x8x8xbf16, #tpu.memory_space<vmem>>, vector<1x1x8x8xbf16>
    %57 = vector.shape_cast %56 : vector<1x1x8x8xbf16> to vector<8x8xbf16>
    %58 = vector.shape_cast %55 : vector<8x8xbf16> to vector<1x1x8x8xbf16>
    tpu.vector_store %arg7[%c0_37, %c2_38, %c0_39, %c0_40], %58 {strides = array<i32>} : memref<1x4x8x8xbf16, #tpu.memory_space<vmem>>, vector<1x1x8x8xbf16>,
    %59 = vector.extract_strided_slice %11 {offsets = [0, 24], sizes = [8, 8], strides = [1, 1]} : vector<8x32xf32> to vector<8x8xf32>
    %60 = arith.truncf %59 : vector<8x8xf32> to vector<8x8xbf16>
    %c0_41 = arith.constant 0 : index
    %c3 = arith.constant 3 : index
    %c0_42 = arith.constant 0 : index
    %c0_43 = arith.constant 0 : index
    %61 = vector.load %arg5[%c0_41, %c3, %c0_42, %c0_43] : memref<1x4x8x8xbf16, #tpu.memory_space<vmem>>, vector<1x1x8x8xbf16>
    %62 = vector.shape_cast %61 : vector<1x1x8x8xbf16> to vector<8x8xbf16>
    %63 = vector.shape_cast %60 : vector<8x8xbf16> to vector<1x1x8x8xbf16>
    tpu.vector_store %arg5[%c0_41, %c3, %c0_42, %c0_43], %63 {strides = array<i32>} : memref<1x4x8x8xbf16, #tpu.memory_space<vmem>>, vector<1x1x8x8xbf16>,
    %64 = vector.extract_strided_slice %12 {offsets = [0, 24], sizes = [8, 8], strides = [1, 1]} : vector<8x32xf32> to vector<8x8xf32>
    %65 = arith.truncf %64 : vector<8x8xf32> to vector<8x8xbf16>
    %c0_44 = arith.constant 0 : index
    %c3_45 = arith.constant 3 : index
    %c0_46 = arith.constant 0 : index
    %c0_47 = arith.constant 0 : index
    %66 = vector.load %arg6[%c0_44, %c3_45, %c0_46, %c0_47] : memref<1x4x8x8xbf16, #tpu.memory_space<vmem>>, vector<1x1x8x8xbf16>
    %67 = vector.shape_cast %66 : vector<1x1x8x8xbf16> to vector<8x8xbf16>
    %68 = vector.shape_cast %65 : vector<8x8xbf16> to vector<1x1x8x8xbf16>
    tpu.vector_store %arg6[%c0_44, %c3_45, %c0_46, %c0_47], %68 {strides = array<i32>} : memref<1x4x8x8xbf16, #tpu.memory_space<vmem>>, vector<1x1x8x8xbf16>,
    %69 = vector.extract_strided_slice %13 {offsets = [0, 24], sizes = [8, 8], strides = [1, 1]} : vector<8x32xf32> to vector<8x8xf32>
    %70 = arith.truncf %69 : vector<8x8xf32> to vector<8x8xbf16>
    %c0_48 = arith.constant 0 : index
    %c3_49 = arith.constant 3 : index
    %c0_50 = arith.constant 0 : index
    %c0_51 = arith.constant 0 : index
    %71 = vector.load %arg7[%c0_48, %c3_49, %c0_50, %c0_51] : memref<1x4x8x8xbf16, #tpu.memory_space<vmem>>, vector<1x1x8x8xbf16>
    %72 = vector.shape_cast %71 : vector<1x1x8x8xbf16> to vector<8x8xbf16>
    %73 = vector.shape_cast %70 : vector<8x8xbf16> to vector<1x1x8x8xbf16>
    tpu.vector_store %arg7[%c0_48, %c3_49, %c0_50, %c0_51], %73 {strides = array<i32>} : memref<1x4x8x8xbf16, #tpu.memory_space<vmem>>, vector<1x1x8x8xbf16>,
    return
  }
  func.func @transform_0(%arg0: i32, %arg1: i32) -> (i32, i32, i32) {
    %c0_i32 = arith.constant 0 : i32
    %c0_i32_0 = arith.constant 0 : i32
    return %arg0, %arg1, %c0_i32 : i32, i32, i32
  }
  func.func @transform_1(%arg0: i32, %arg1: i32) -> (i32, i32) {
    %c0_i32 = arith.constant 0 : i32
    %c0_i32_0 = arith.constant 0 : i32
    %c0_i32_1 = arith.constant 0 : i32
    return %c0_i32, %c0_i32_0 : i32, i32
  }
  func.func @transform_2(%arg0: i32, %arg1: i32) -> (i32, i32) {
    %c0_i32 = arith.constant 0 : i32
    %c0_i32_0 = arith.constant 0 : i32
    %c0_i32_1 = arith.constant 0 : i32
    return %c0_i32, %c0_i32_0 : i32, i32
  }
  func.func @transform_3(%arg0: i32, %arg1: i32) -> (i32, i32, i32, i32) {
    %c0_i32 = arith.constant 0 : i32
    %c0_i32_0 = arith.constant 0 : i32
    %c0_i32_1 = arith.constant 0 : i32
    return %arg0, %c0_i32, %arg1, %c0_i32_0 : i32, i32, i32, i32
  }
  func.func @transform_4(%arg0: i32, %arg1: i32) -> (i32, i32, i32, i32) {
    %c0_i32 = arith.constant 0 : i32
    %c0_i32_0 = arith.constant 0 : i32
    %c0_i32_1 = arith.constant 0 : i32
    return %arg0, %c0_i32, %arg1, %c0_i32_0 : i32, i32, i32, i32
  }
  func.func @transform_5(%arg0: i32, %arg1: i32) -> (i32, i32, i32, i32) {
    %c0_i32 = arith.constant 0 : i32
    %c0_i32_0 = arith.constant 0 : i32
    %c0_i32_1 = arith.constant 0 : i32
    return %arg0, %c0_i32, %arg1, %c0_i32_0 : i32, i32, i32, i32
  }
}

</mosaic_0001>

<llo_original>
// kernel: tpu_custom_call.1
$region0: #{tpu_custom_call.1}
  #allocation0 [shape = 'u32[]', space=smem, size = 0x4, offset = 0x4, fixed_abs, tag = 'smem constant byte address 0x4 - core index']
  #allocation1 [shape = 'u32[144,128]{1,0:T(1,128)}', space=vmem, size = 0x12000, scoped, tag = 'internal scratch']
  %s0 = inlined_call_operand.hbm [shape: f32[8,128], index: 0, kind: input, shape index: {}]
  %s1 = inlined_call_operand.hbm [shape: f32[8,128], index: 1, kind: output, shape index: {}]
  %s2 = sld [smem:[#allocation0]]
  $region18: #{tpu_custom_call.1} parent=0
    _
  %s4 = ssub.s32 1, %s2
  %s5 = scalar_select 0, %s4, %s2
  $region1: #{tpu_custom_call.1} parent=0
    #allocation2 [shape = 'u8[4096]{0}', space=vmem, size = 0x1000, scoped, tag = 'input window, operand 0, single buffered']
    #allocation3 [shape = 's32[1]{0}', space=sflag, size = 0x4, scoped, tag = 'scoped memory for tpu_custom_call.1']
    #allocation4 [shape = 's32[1]{0}', space=sflag, size = 0x4, scoped, tag = 'scoped memory for tpu_custom_call.1']
    #allocation5 [shape = 'u8[4096]{0}', space=vmem, size = 0x1000, scoped, tag = 'output window, operand 0, single buffered']
    %6 = vsyncpa [#allocation3], 0
    %7 = vsyncpa [#allocation4], 0
    // Predicated region
    $region2: #{tpu_custom_call.1} parent=1 // pred_check
      _
    $region3: #{tpu_custom_call.1} parent=1 // pred_check_branch
      %9 = sbr.rel (0) target = $region5
    $region4: #{tpu_custom_call.1} parent=1 // pred_region
      %s11 = ssub.s32 128, 128
      %12 = vsyncadd [#allocation3], %s11
      %s14 = sshll.u32 [#allocation2], 4
      %s15 = int_to_ptr.vmem [resolvable:$true] %s14
      %17 = dma.hbm_to_vmem [thread:$0]  %s0, 128, %s15, [#allocation3]
    $region5: #{tpu_custom_call.1} parent=1 // pred_fallthru
      _
    // Predicated region
    $region6: #{tpu_custom_call.1} parent=1 // pred_check
      _
    $region7: #{tpu_custom_call.1} parent=1 // pred_check_branch
      %19 = sbr.rel (0) target = $region9
    $region8: #{tpu_custom_call.1} parent=1 // pred_region
      %20 = dma.done [#allocation3], 128
    $region9: #{tpu_custom_call.1} parent=1 // pred_fallthru
      _
    %v21 = vld [vmem:[#allocation2] sm:$0xff]
    %22 = vst [vmem:[#allocation5] sm:$0xff] %v21
    // Predicated region
    $region10: #{tpu_custom_call.1} parent=1 // pred_check
      _
    $region11: #{tpu_custom_call.1} parent=1 // pred_check_branch
      %24 = sbr.rel (0) target = $region13
    $region12: #{tpu_custom_call.1} parent=1 // pred_region
      %s26 = ssub.s32 128, 128
      %27 = vsyncadd [#allocation4], %s26
      %s29 = sshll.u32 [#allocation5], 4
      %s30 = int_to_ptr.vmem [resolvable:$true] %s29
      %32 = dma.vmem_to_hbm [thread:$0]  %s30, 128, %s1, [#allocation4]
    $region13: #{tpu_custom_call.1} parent=1 // pred_fallthru
      _
    // Predicated region
    $region14: #{tpu_custom_call.1} parent=1 // pred_check
      _
    $region15: #{tpu_custom_call.1} parent=1 // pred_check_branch
      %34 = sbr.rel (0) target = $region17
    $region16: #{tpu_custom_call.1} parent=1 // pred_region
      %35 = dma.done [#allocation4], 128
    $region17: #{tpu_custom_call.1} parent=1 // pred_fallthru
      _
    %36 = vsyncpa [#allocation3], 1
    %37 = vsyncpa [#allocation4], 1

// kernel: tpu_custom_call.1
$region0: #{tpu_custom_call.1}
  #allocation0 [shape = 'u32[]', space=smem, size = 0x4, offset = 0x4, fixed_abs, tag = 'smem constant byte address 0x4 - core index']
  #allocation1 [shape = 'u32[144,128]{1,0:T(1,128)}', space=vmem, size = 0x12000, scoped, tag = 'internal scratch']
  %s0 = inlined_call_operand.hbm [shape: bf16[2,8,32], index: 0, kind: input, shape index: {}]
  %s1 = inlined_call_operand.hbm [shape: bf16[32,96], index: 1, kind: input, shape index: {}]
  %s2 = inlined_call_operand.vmem [shape: f32[1,96], index: 2, kind: input, shape index: {}]
  %s3 = inlined_call_operand.hbm [shape: bf16[2,4,8,8], index: 3, kind: output, shape index: {0}]
  %s4 = inlined_call_operand.hbm [shape: bf16[2,4,8,8], index: 4, kind: output, shape index: {1}]
  %s5 = inlined_call_operand.hbm [shape: bf16[2,4,8,8], index: 5, kind: output, shape index: {2}]
  %6 = xla_tuple %s3, %s4, %s5
  %s7 = sld [smem:[#allocation0]]
  $region69: #{tpu_custom_call.1} parent=0
    _
  %s9 = ssub.s32 1, %s7
  %s10 = scalar_select 0, %s9, %s7
  $region1: #{tpu_custom_call.1} parent=0
    #allocation2 [shape = 'u8[4096]{0}', space=vmem, size = 0x1000, scoped, tag = 'input window, operand 0']
    #allocation3 [shape = 's32[2]{0}', space=sflag, size = 0x8, scoped, tag = 'scoped memory for tpu_custom_call.1']
    #allocation4 [shape = 's32[2]{0}', space=sflag, size = 0x8, scoped, tag = 'scoped memory for tpu_custom_call.1']
    #allocation5 [shape = 'u8[8192]{0}', space=vmem, size = 0x2000, scoped, tag = 'input window, operand 1, single buffered']
    #allocation6 [shape = 's32[1]{0}', space=sflag, size = 0x4, scoped, tag = 'scoped memory for tpu_custom_call.1']
    #allocation7 [shape = 'u8[16384]{0}', space=vmem, size = 0x4000, scoped, tag = 'output window, operand 0']
    #allocation8 [shape = 'u8[16384]{0}', space=vmem, size = 0x4000, scoped, tag = 'output window, operand 1']
    #allocation9 [shape = 's32[2]{0}', space=sflag, size = 0x8, scoped, tag = 'scoped memory for tpu_custom_call.1']
    #allocation10 [shape = 'u8[16384]{0}', space=vmem, size = 0x4000, scoped, tag = 'output window, operand 2']
    %11 = vsyncpa [#allocation3], 0
    %s12 = scalar_lea.sflag [#allocation3], 1
    %13 = vsyncpa %s12, 0
    %14 = vsyncpa [#allocation6], 0
    %15 = vsyncpa [#allocation4], 0
    %s16 = scalar_lea.sflag [#allocation4], 1
    %17 = vsyncpa %s16, 0
    %18 = vsyncpa [#allocation9], 0
    %s19 = scalar_lea.sflag [#allocation9], 1
    %20 = vsyncpa %s19, 0
    loop: start=0, step=1, limit=4
    $region2: #{tpu_custom_call.1} parent=1 // loop_pre_header
      _
    $region3: #{tpu_custom_call.1} parent=1 // loop_header
      %s22 = sphi 0, %s26
      %p23 = scmp.ge.s32.totalorder %s22, 4
      %s29 = sphi 0, %s41
      %s30 = sphi 0, %s37
      %s31 = sphi 0, %s29
      %s32 = sphi 0, %s30
      %s33 = sphi 0, %s31
      %s34 = sphi 0, %s32
      %s46 = sphi 0, %s48
      %s49 = sphi 0, %s46
      %s50 = sphi 0, %s49
      %s66 = sphi 0, %s50
      %s70 = sphi 0, %s70
      %s72 = sphi 0, %s70
      %s73 = sphi 0, %s72
      %s87 = sphi 0, %s73
      %s91 = sphi 0, %s91
      %s93 = sphi 0, %s91
      %s94 = sphi 0, %s93
      %s108 = sphi 0, %s94
      %s116 = sphi 0, %s118
      %s119 = sphi 0, %s116
      %s120 = sphi 0, %s119
      %s136 = sphi 0, %s120
      %s144 = sphi 0, %s146
      %s147 = sphi 0, %s144
      %s148 = sphi 0, %s147
      %s164 = sphi 0, %s148
      %s172 = sphi 0, %s174
      %s175 = sphi 0, %s172
      %s176 = sphi 0, %s175
      %s192 = sphi 0, %s176
    $region4: #{tpu_custom_call.1} parent=1 // loop_header_branch
      %25 = sbr.rel (%p23) target = $region8
    $region5: #{tpu_custom_call.1} parent=1 // loop_body
      %s27 = ssub.s32 %s22, 1
      %s28 = ssub.s32 %s22, 2
      %s35 = sadd.s32 1, %s30
      %p36 = scmp.ge.s32.totalorder %s35, 1
      %s37 = scalar_select %p36, 0, %s35
      %s38 = sadd.s32 1, %s29
      %s39 = scalar_select %p36, %s38, %s29
      %p40 = scmp.ge.s32.totalorder %s39, 2
      %s41 = scalar_select %p40, 0, %s39
      %s42 = ssub.s32 %s29, %s41
      %s43 = ssub.s32 %s30, %s37
      %s44 = sor.u32 %s42, %s43
      %p45 = scmp.eq.s32.totalorder %s44, 0
      %s47 = sadd.s32 %s46, 1
      %s48 = scalar_select %p45, %s46, %s47
      %p51 = pneg %p45
      %p52 = scmp.eq.s32.totalorder %s22, 1
      %p53 = por %p51, %p52
      %p54 = scmp.ne.s32.totalorder %s46, %s49
      %p55 = scmp.eq.s32.totalorder %s22, 0
      %p56 = por %p54, %p55
      %p57 = scmp.ne.s32.totalorder %s46, %s49
      %p58 = scmp.eq.s32.totalorder %s27, 1
      %p59 = por %p57, %p58
      %p60 = scmp.ne.s32.totalorder %s49, %s50
      %p61 = scmp.eq.s32.totalorder %s27, 0
      %p62 = por %p60, %p61
      %p63 = scmp.ne.s32.totalorder %s49, %s50
      %p64 = scmp.eq.s32.totalorder %s28, 1
      %p65 = por %p63, %p64
      %p67 = scmp.ne.s32.totalorder %s50, %s66
      %p68 = scmp.eq.s32.totalorder %s28, 0
      %p69 = por %p67, %p68
      %s71 = sadd.s32 %s70, 1
      %p74 = scmp.eq.s32.totalorder %s22, 1
      %p75 = scmp.ne.s32.totalorder %s70, %s72
      %p76 = scmp.eq.s32.totalorder %s22, 0
      %p77 = por %p75, %p76
      %p78 = scmp.ne.s32.totalorder %s70, %s72
      %p79 = scmp.eq.s32.totalorder %s27, 1
      %p80 = por %p78, %p79
      %p81 = scmp.ne.s32.totalorder %s72, %s73
      %p82 = scmp.eq.s32.totalorder %s27, 0
      %p83 = por %p81, %p82
      %p84 = scmp.ne.s32.totalorder %s72, %s73
      %p85 = scmp.eq.s32.totalorder %s28, 1
      %p86 = por %p84, %p85
      %p88 = scmp.ne.s32.totalorder %s73, %s87
      %p89 = scmp.eq.s32.totalorder %s28, 0
      %p90 = por %p88, %p89
      %s92 = sadd.s32 %s91, 1
      %p95 = scmp.eq.s32.totalorder %s22, 1
      %p96 = scmp.ne.s32.totalorder %s91, %s93
      %p97 = scmp.eq.s32.totalorder %s22, 0
      %p98 = por %p96, %p97
      %p99 = scmp.ne.s32.totalorder %s91, %s93
      %p100 = scmp.eq.s32.totalorder %s27, 1
      %p101 = por %p99, %p100
      %p102 = scmp.ne.s32.totalorder %s93, %s94
      %p103 = scmp.eq.s32.totalorder %s27, 0
      %p104 = por %p102, %p103
      %p105 = scmp.ne.s32.totalorder %s93, %s94
      %p106 = scmp.eq.s32.totalorder %s28, 1
      %p107 = por %p105, %p106
      %p109 = scmp.ne.s32.totalorder %s94, %s108
      %p110 = scmp.eq.s32.totalorder %s28, 0
      %p111 = por %p109, %p110
      %s112 = ssub.s32 %s29, %s41
      %s113 = ssub.s32 %s30, %s37
      %s114 = sor.u32 %s112, %s113
      %p115 = scmp.eq.s32.totalorder %s114, 0
      %s117 = sadd.s32 %s116, 1
      %s118 = scalar_select %p115, %s116, %s117
      %p121 = pneg %p115
      %p122 = scmp.eq.s32.totalorder %s22, 1
      %p123 = por %p121, %p122
      %p124 = scmp.ne.s32.totalorder %s116, %s119
      %p125 = scmp.eq.s32.totalorder %s22, 0
      %p126 = por %p124, %p125
      %p127 = scmp.ne.s32.totalorder %s116, %s119
      %p128 = scmp.eq.s32.totalorder %s27, 1
      %p129 = por %p127, %p128
      %p130 = scmp.ne.s32.totalorder %s119, %s120
      %p131 = scmp.eq.s32.totalorder %s27, 0
      %p132 = por %p130, %p131
      %p133 = scmp.ne.s32.totalorder %s119, %s120
      %p134 = scmp.eq.s32.totalorder %s28, 1
      %p135 = por %p133, %p134
      %p137 = scmp.ne.s32.totalorder %s120, %s136
      %p138 = scmp.eq.s32.totalorder %s28, 0
      %p139 = por %p137, %p138
      %s140 = ssub.s32 %s29, %s41
      %s141 = ssub.s32 %s30, %s37
      %s142 = sor.u32 %s140, %s141
      %p143 = scmp.eq.s32.totalorder %s142, 0
      %s145 = sadd.s32 %s144, 1
      %s146 = scalar_select %p143, %s144, %s145
      %p149 = pneg %p143
      %p150 = scmp.eq.s32.totalorder %s22, 1
      %p151 = por %p149, %p150
      %p152 = scmp.ne.s32.totalorder %s144, %s147
      %p153 = scmp.eq.s32.totalorder %s22, 0
      %p154 = por %p152, %p153
      %p155 = scmp.ne.s32.totalorder %s144, %s147
      %p156 = scmp.eq.s32.totalorder %s27, 1
      %p157 = por %p155, %p156
      %p158 = scmp.ne.s32.totalorder %s147, %s148
      %p159 = scmp.eq.s32.totalorder %s27, 0
      %p160 = por %p158, %p159
      %p161 = scmp.ne.s32.totalorder %s147, %s148
      %p162 = scmp.eq.s32.totalorder %s28, 1
      %p163 = por %p161, %p162
      %p165 = scmp.ne.s32.totalorder %s148, %s164
      %p166 = scmp.eq.s32.totalorder %s28, 0
      %p167 = por %p165, %p166
      %s168 = ssub.s32 %s29, %s41
      %s169 = ssub.s32 %s30, %s37
      %s170 = sor.u32 %s168, %s169
      %p171 = scmp.eq.s32.totalorder %s170, 0
      %s173 = sadd.s32 %s172, 1
      %s174 = scalar_select %p171, %s172, %s173
      %p177 = pneg %p171
      %p178 = scmp.eq.s32.totalorder %s22, 1
      %p179 = por %p177, %p178
      %p180 = scmp.ne.s32.totalorder %s172, %s175
      %p181 = scmp.eq.s32.totalorder %s22, 0
      %p182 = por %p180, %p181
      %p183 = scmp.ne.s32.totalorder %s172, %s175
      %p184 = scmp.eq.s32.totalorder %s27, 1
      %p185 = por %p183, %p184
      %p186 = scmp.ne.s32.totalorder %s175, %s176
      %p187 = scmp.eq.s32.totalorder %s27, 0
      %p188 = por %p186, %p187
      %p189 = scmp.ne.s32.totalorder %s175, %s176
      %p190 = scmp.eq.s32.totalorder %s28, 1
      %p191 = por %p189, %p190
      %p193 = scmp.ne.s32.totalorder %s176, %s192
      %p194 = scmp.eq.s32.totalorder %s28, 0
      %p195 = por %p193, %p194
      %p196 = scmp.le.s32.totalorder 1, %s22
      %p197 = scmp.lt.s32.totalorder %s22, 3
      %p198 = pnand %p196, %p197
      %p199 = pneg %p198
      // Predicated region
      $region9: #{tpu_custom_call.1} parent=5 // pred_check
        _
      $region10: #{tpu_custom_call.1} parent=5 // pred_check_branch
        %201 = sbr.rel (%p198) target = $region12
      $region11: #{tpu_custom_call.1} parent=5 // pred_region
        %s202 = ssub.s32 %s22, 1
        // Predicated region
        $region13: #{tpu_custom_call.1} parent=11 // pred_check
          %p203 = pneg %p83
        $region14: #{tpu_custom_call.1} parent=11 // pred_check_branch
          %205 = sbr.rel (%p203) target = $region16
        $region15: #{tpu_custom_call.1} parent=11 // pred_region
          %s207 = ssub.s32 256, 256
          %208 = vsyncadd [#allocation6], %s207
          %s209 = sshll.u32 [#allocation5], 4
          %s210 = int_to_ptr.vmem [resolvable:$true] %s209
          %215 = dma.hbm_to_vmem [thread:$0]  %s1, 256, %s210, [#allocation6], 64, 64, 4
        $region16: #{tpu_custom_call.1} parent=11 // pred_fallthru
          _
        // Predicated region
        $region17: #{tpu_custom_call.1} parent=11 // pred_check
          %p216 = pneg %p104
        $region18: #{tpu_custom_call.1} parent=11 // pred_check_branch
          %218 = sbr.rel (%p216) target = $region20
        $region19: #{tpu_custom_call.1} parent=11 // pred_region
          _
        $region20: #{tpu_custom_call.1} parent=11 // pred_fallthru
          _
      $region12: #{tpu_custom_call.1} parent=5 // pred_fallthru
        _
      %p219 = scmp.lt.s32.totalorder %s22, 2
      // Predicated region
      $region21: #{tpu_custom_call.1} parent=5 // pred_check
        %p220 = pneg %p219
      $region22: #{tpu_custom_call.1} parent=5 // pred_check_branch
        %222 = sbr.rel (%p220) target = $region24
      $region23: #{tpu_custom_call.1} parent=5 // pred_region
        // Predicated region
        $region25: #{tpu_custom_call.1} parent=23 // pred_check
          %p223 = pneg %p56
        $region26: #{tpu_custom_call.1} parent=23 // pred_check_branch
          %225 = sbr.rel (%p223) target = $region28
        $region27: #{tpu_custom_call.1} parent=23 // pred_region
          %s226 = sand.u32 %s46, 1
          %s227 = scalar_lea.sflag [#allocation3], %s226
          %s228 = sand.u32 %s46, 1
          %s229 = smul.addr %s228, 4
          %s230 = scalar_lea.vmem [#allocation2], %s229
          %s232 = ssub.s32 64, 64
          %233 = vsyncadd %s227, %s232
          %s234 = sadd.s32 %s30, %s29
          %s235 = smul.addr %s234, 64
          %s236 = scalar_lea.hbm %s0, %s235
          %s238 = sshll.u32 %s230, 4
          %s239 = int_to_ptr.vmem [resolvable:$true] %s238
          %241 = dma.hbm_to_vmem [thread:$0]  %s236, 64, %s239, %s227
        $region28: #{tpu_custom_call.1} parent=23 // pred_fallthru
          _
      $region24: #{tpu_custom_call.1} parent=5 // pred_fallthru
        _
      %p242 = scmp.le.s32.totalorder 1, %s22
      %p243 = scmp.lt.s32.totalorder %s22, 3
      %p244 = pnand %p242, %p243
      %p245 = pneg %p244
      // Predicated region
      $region29: #{tpu_custom_call.1} parent=5 // pred_check
        _
      $region30: #{tpu_custom_call.1} parent=5 // pred_check_branch
        %247 = sbr.rel (%p244) target = $region32
      $region31: #{tpu_custom_call.1} parent=5 // pred_region
        %s248 = ssub.s32 %s22, 1
        %s249 = sand.u32 %s49, 1
        %s250 = scalar_lea.sflag [#allocation3], %s249
        %s251 = sand.u32 %s49, 1
        %s252 = smul.addr %s251, 4
        %s253 = scalar_lea.vmem [#allocation2], %s252
        // Predicated region
        $region33: #{tpu_custom_call.1} parent=31 // pred_check
          %p254 = pneg %p62
        $region34: #{tpu_custom_call.1} parent=31 // pred_check_branch
          %256 = sbr.rel (%p254) target = $region36
        $region35: #{tpu_custom_call.1} parent=31 // pred_region
          %257 = dma.done %s250, 64
        $region36: #{tpu_custom_call.1} parent=31 // pred_fallthru
          _
        // Predicated region
        $region37: #{tpu_custom_call.1} parent=31 // pred_check
          %p258 = pneg %p83
        $region38: #{tpu_custom_call.1} parent=31 // pred_check_branch
          %260 = sbr.rel (%p258) target = $region40
        $region39: #{tpu_custom_call.1} parent=31 // pred_region
          %261 = dma.done [#allocation6], 256
        $region40: #{tpu_custom_call.1} parent=31 // pred_fallthru
          _
        %s262 = sand.u32 %s49, 1
        %s263 = scalar_lea.sflag [#allocation3], %s262
        %s264 = sand.u32 %s49, 1
        %s265 = smul.addr %s264, 4
        %s266 = scalar_lea.vmem [#allocation2], %s265
        %p267 = pneg %p62
        %p268 = pneg %p59
        %p269 = pneg %p83
        %p270 = pneg %p80
        %p271 = pneg %p104
        %p272 = pneg %p101
        %p273 = pneg %p132
        %p274 = pneg %p129
        %s275 = sand.u32 %s119, 1
        %s276 = scalar_lea.sflag [#allocation4], %s275
        %s277 = sand.u32 %s119, 1
        %s278 = smul.addr %s277, 16
        %s279 = scalar_lea.vmem [#allocation7], %s278
        %p280 = pneg %p160
        %p281 = pneg %p157
        %s282 = sand.u32 %s27, 1
        %s283 = scalar_lea.sflag [#allocation9], %s282
        %s284 = sand.u32 %s147, 1
        %s285 = smul.addr %s284, 16
        %s286 = scalar_lea.vmem [#allocation8], %s285
        %p287 = pneg %p188
        %p288 = pneg %p185
        %s289 = sand.u32 %s27, 1
        %s290 = scalar_lea.sflag [#allocation9], %s289
        %s291 = sand.u32 %s175, 1
        %s292 = smul.addr %s291, 16
        %s293 = scalar_lea.vmem [#allocation10], %s292
        %v295 = vld [vmem:[%s253] sm:$0xf]
        %v296 = vld [vmem:[#allocation5] sm:$0xf]
        %v297 = vld [vmem:[#allocation5 + $0x4] sm:$0xf]
        %v298 = vld [vmem:[#allocation5 + $0x8] sm:$0xf]
        %v299 = vld [vmem:[#allocation5 + $0xc] sm:$0xf]
        %v300 = vld [vmem:[%s2] sm:$0x1]
        %v302 = vlaneseq
        %v303 = vshrl.u32 %v302, 7
        %v304 = vsub.s32 0, %v303
        %v305 = vrot.slane %v300, %v304
        %v311 = vunpack.c.l.b16 %v296
        %v312 = vunpack.c.l.b16 %v297
        %v313 = vunpack.c.l.b16 %v298
        %v314 = vunpack.c.l.b16 %v299
        %v315 = vpack.c.b16 %v312, %v311
        %v316 = vpack.c.b16 %v314, %v313
        %vm319 = vcmask 261120
        %v321 = vsel %vm319, %v295, 0
        %323 = vmatprep.subr.bf16.mxu0 0
        %324 = vmatpush1.bf16.msra.mxu0 0
        %325 = vmatprep.subr.bf16.mxu0 0
        %326 = vmatpush1.bf16.msra.mxu0 0
        %327 = vmatprep.subr.bf16.mxu0 0
        %328 = vmatpush1.bf16.msra.mxu0 0
        %329 = vmatprep.subr.bf16.mxu0 0
        %330 = vmatpush1.bf16.msra.mxu0 0
        %331 = vmatprep.subr.bf16.mxu0 0
        %332 = vmatpush1.bf16.msra.mxu0 0
        %333 = vmatprep.subr.bf16.mxu0 0
        %334 = vmatpush1.bf16.msra.mxu0 0
        %335 = vmatprep.subr.bf16.mxu0 0
        %336 = vmatpush1.bf16.msra.mxu0 %v316
        %337 = vmatprep.subr.bf16.mxu0 0
        %338 = vmatpush1.bf16.msra.mxu0 %v315
        %339 = vmatprep.subr.bf16.mxu0 0
        %340 = vmatpush2.bf16.msra.mxu0 0
        %341 = vmatprep.subr.bf16.mxu0 0
        %342 = vmatpush2.bf16.msra.mxu0 0
        %343 = vmatprep.subr.bf16.mxu0 0
        %344 = vmatpush2.bf16.msra.mxu0 0
        %345 = vmatprep.subr.bf16.mxu0 0
        %346 = vmatpush2.bf16.msra.mxu0 0
        %347 = vmatprep.subr.bf16.mxu0 0
        %348 = vmatpush2.bf16.msra.mxu0 0
        %349 = vmatprep.subr.bf16.mxu0 0
        %350 = vmatpush2.bf16.msra.mxu0 0
        %351 = vmatprep.subr.bf16.mxu0 0
        %352 = vmatpush2.bf16.msra.mxu0 0
        %353 = vmatprep.subr.bf16.mxu0 0
        %354 = vmatpush2.bf16.msra.mxu0 0
        %355 = vmatprep.mubr.bf16.mxu0 0
        %356 = vmatmul.mubr.bf16.gmra.mxu0 %v321
        %v357 = vpop.f32.mrf.mxu0
        %v358 = vadd.f32 %v305, %v357
        %v359 = vpop.f32.mrf.mxu0
        %v360 = vpop.f32.mrf.mxu0
        %v361 = vpop.f32.mrf.mxu0
        %362 = vdwg.mxu0
        %v363 = vmul.f32 %v358, 0.35355338
        %v364 = vpack.c.bf16 %v363, %v363
        %vm365 = vcmask 60416
        %366 = vst.msk [vmem:[%s279] sm:$0xf] %vm365, %v364
        %v367 = vpack.c.bf16 %v358, %v358
        %v369 = vunpack.c.l.b16 %v367
        %v370 = vpack.c.b16 %v369, %v369
        %371 = vrot.lane.b32.xlu0 %v370, 96
        %v372 = vpop.permute.xlu0 %371
        %374 = vst.msk [vmem:[%s286] sm:$0xf] %vm365, %v372
        %375 = vrot.lane.b32.xlu0 %v370, 64
        %v376 = vpop.permute.xlu0 %375
        %378 = vst.msk [vmem:[%s293] sm:$0xf] %vm365, %v376
        %v380 = vunpack.c.l.b16 %v364
        %v381 = vpack.c.b16 %v380, %v380
        %382 = vrot.lane.b32.xlu0 %v381, 120
        %v383 = vpop.permute.xlu0 %382
        %s385 = scalar_lea.vmem %s279, 4 [#allocation7]
        %386 = vst.msk [vmem:[%s385] sm:$0xf] %vm365, %v383
        %387 = vrot.lane.b32.xlu0 %v370, 88
        %v388 = vpop.permute.xlu0 %387
        %s390 = scalar_lea.vmem %s286, 4 [#allocation8]
        %391 = vst.msk [vmem:[%s390] sm:$0xf] %vm365, %v388
        %392 = vrot.lane.b32.xlu0 %v370, 56
        %v393 = vpop.permute.xlu0 %392
        %s395 = scalar_lea.vmem %s293, 4 [#allocation10]
        %396 = vst.msk [vmem:[%s395] sm:$0xf] %vm365, %v393
        %397 = vrot.lane.b32.xlu0 %v381, 112
        %v398 = vpop.permute.xlu0 %397
        %s400 = scalar_lea.vmem %s279, 8 [#allocation7]
        %401 = vst.msk [vmem:[%s400] sm:$0xf] %vm365, %v398
        %402 = vrot.lane.b32.xlu0 %v370, 80
        %v403 = vpop.permute.xlu0 %402
        %s405 = scalar_lea.vmem %s286, 8 [#allocation8]
        %406 = vst.msk [vmem:[%s405] sm:$0xf] %vm365, %v403
        %407 = vrot.lane.b32.xlu0 %v370, 48
        %v408 = vpop.permute.xlu0 %407
        %s410 = scalar_lea.vmem %s293, 8 [#allocation10]
        %411 = vst.msk [vmem:[%s410] sm:$0xf] %vm365, %v408
        %412 = vrot.lane.b32.xlu0 %v381, 104
        %v413 = vpop.permute.xlu0 %412
        %s415 = scalar_lea.vmem %s279, 12 [#allocation7]
        %416 = vst.msk [vmem:[%s415] sm:$0xf] %vm365, %v413
        %417 = vrot.lane.b32.xlu0 %v370, 72
        %v418 = vpop.permute.xlu0 %417
        %s420 = scalar_lea.vmem %s286, 12 [#allocation8]
        %421 = vst.msk [vmem:[%s420] sm:$0xf] %vm365, %v418
        %422 = vrot.lane.b32.xlu0 %v370, 40
        %v423 = vpop.permute.xlu0 %422
        %s425 = scalar_lea.vmem %s293, 12 [#allocation10]
        %426 = vst.msk [vmem:[%s425] sm:$0xf] %vm365, %v423
        %s427 = sand.u32 %s119, 1
        %s428 = scalar_lea.sflag [#allocation4], %s427
        %s429 = sand.u32 %s119, 1
        %s430 = smul.addr %s429, 16
        %s431 = scalar_lea.vmem [#allocation7], %s430
        %s432 = sand.u32 %s27, 1
        %s433 = scalar_lea.sflag [#allocation9], %s432
        %s434 = sand.u32 %s147, 1
        %s435 = smul.addr %s434, 16
        %s436 = scalar_lea.vmem [#allocation8], %s435
        %s437 = sand.u32 %s27, 1
        %s438 = scalar_lea.sflag [#allocation9], %s437
        %s439 = sand.u32 %s175, 1
        %s440 = smul.addr %s439, 16
        %s441 = scalar_lea.vmem [#allocation10], %s440
        // Predicated region
        $region41: #{tpu_custom_call.1} parent=31 // pred_check
          %p442 = pneg %p129
        $region42: #{tpu_custom_call.1} parent=31 // pred_check_branch
          %444 = sbr.rel (%p442) target = $region44
        $region43: #{tpu_custom_call.1} parent=31 // pred_region
          %s446 = ssub.s32 256, 256
          %447 = vsyncadd %s428, %s446
          %s448 = smul.addr %s31, 4
          %s449 = sadd.s32 %s32, %s448
          %s450 = smul.addr %s449, 64
          %s451 = scalar_lea.hbm %s3, %s450
          %s452 = sshll.u32 %s431, 4
          %s453 = int_to_ptr.vmem [resolvable:$true] %s452
          %458 = dma.vmem_to_hbm [thread:$0]  %s453, 256, %s451, %s428, 64, 64, 4
        $region44: #{tpu_custom_call.1} parent=31 // pred_fallthru
          _
        // Predicated region
        $region45: #{tpu_custom_call.1} parent=31 // pred_check
          %p459 = pneg %p157
        $region46: #{tpu_custom_call.1} parent=31 // pred_check_branch
          %461 = sbr.rel (%p459) target = $region48
        $region47: #{tpu_custom_call.1} parent=31 // pred_region
          %s463 = ssub.s32 256, 256
          %464 = vsyncadd %s433, %s463
          %s465 = smul.addr %s31, 4
          %s466 = sadd.s32 %s32, %s465
          %s467 = smul.addr %s466, 64
          %s468 = scalar_lea.hbm %s4, %s467
          %s469 = sshll.u32 %s436, 4
          %s470 = int_to_ptr.vmem [resolvable:$true] %s469
          %475 = dma.vmem_to_hbm [thread:$0]  %s470, 256, %s468, %s433, 64, 64, 4
        $region48: #{tpu_custom_call.1} parent=31 // pred_fallthru
          _
        // Predicated region
        $region49: #{tpu_custom_call.1} parent=31 // pred_check
          %p476 = pneg %p185
        $region50: #{tpu_custom_call.1} parent=31 // pred_check_branch
          %478 = sbr.rel (%p476) target = $region52
        $region51: #{tpu_custom_call.1} parent=31 // pred_region
          %s480 = ssub.s32 256, 256
          %481 = vsyncadd %s438, %s480
          %s482 = smul.addr %s31, 4
          %s483 = sadd.s32 %s32, %s482
          %s484 = smul.addr %s483, 64
          %s485 = scalar_lea.hbm %s5, %s484
          %s486 = sshll.u32 %s441, 4
          %s487 = int_to_ptr.vmem [resolvable:$true] %s486
          %492 = dma.vmem_to_hbm [thread:$0]  %s487, 256, %s485, %s438, 64, 64, 4
        $region52: #{tpu_custom_call.1} parent=31 // pred_fallthru
          _
      $region32: #{tpu_custom_call.1} parent=5 // pred_fallthru
        _
      %p493 = scmp.le.s32.totalorder 2, %s22
      // Predicated region
      $region53: #{tpu_custom_call.1} parent=5 // pred_check
        %p494 = pneg %p493
      $region54: #{tpu_custom_call.1} parent=5 // pred_check_branch
        %496 = sbr.rel (%p494) target = $region56
      $region55: #{tpu_custom_call.1} parent=5 // pred_region
        %s497 = ssub.s32 %s22, 2
        // Predicated region
        $region57: #{tpu_custom_call.1} parent=55 // pred_check
          %p498 = pneg %p135
        $region58: #{tpu_custom_call.1} parent=55 // pred_check_branch
          %500 = sbr.rel (%p498) target = $region60
        $region59: #{tpu_custom_call.1} parent=55 // pred_region
          %s501 = sand.u32 %s120, 1
          %s502 = scalar_lea.sflag [#allocation4], %s501
          %s503 = sand.u32 %s120, 1
          %s504 = smul.addr %s503, 16
          %s505 = scalar_lea.vmem [#allocation7], %s504
          %506 = dma.done %s502, 256
        $region60: #{tpu_custom_call.1} parent=55 // pred_fallthru
          _
        // Predicated region
        $region61: #{tpu_custom_call.1} parent=55 // pred_check
          %p507 = pneg %p163
        $region62: #{tpu_custom_call.1} parent=55 // pred_check_branch
          %509 = sbr.rel (%p507) target = $region64
        $region63: #{tpu_custom_call.1} parent=55 // pred_region
          %s510 = sand.u32 %s28, 1
          %s511 = scalar_lea.sflag [#allocation9], %s510
          %s512 = sand.u32 %s148, 1
          %s513 = smul.addr %s512, 16
          %s514 = scalar_lea.vmem [#allocation8], %s513
          %515 = dma.done %s511, 256
        $region64: #{tpu_custom_call.1} parent=55 // pred_fallthru
          _
        // Predicated region
        $region65: #{tpu_custom_call.1} parent=55 // pred_check
          %p516 = pneg %p191
        $region66: #{tpu_custom_call.1} parent=55 // pred_check_branch
          %518 = sbr.rel (%p516) target = $region68
        $region67: #{tpu_custom_call.1} parent=55 // pred_region
          %s519 = sand.u32 %s28, 1
          %s520 = scalar_lea.sflag [#allocation9], %s519
          %s521 = sand.u32 %s176, 1
          %s522 = smul.addr %s521, 16
          %s523 = scalar_lea.vmem [#allocation10], %s522
          %524 = dma.done %s520, 256
        $region68: #{tpu_custom_call.1} parent=55 // pred_fallthru
          _
      $region56: #{tpu_custom_call.1} parent=5 // pred_fallthru
        _
    $region6: #{tpu_custom_call.1} parent=1 // loop_footer
      %s26 = sadd.s32 1, %s22
    $region7: #{tpu_custom_call.1} parent=1 // loop_footer_branch
      %21 = sbr.rel target = $region3
    $region8: #{tpu_custom_call.1} parent=1 // loop_exit
      _
    %525 = vsyncpa [#allocation3], 1
    %s526 = scalar_lea.sflag [#allocation3], 1
    %527 = vsyncpa %s526, 1
    %528 = vsyncpa [#allocation6], 1
    %529 = vsyncpa [#allocation4], 1
    %s530 = scalar_lea.sflag [#allocation4], 1
    %531 = vsyncpa %s530, 1
    %532 = vsyncpa [#allocation9], 1
    %s533 = scalar_lea.sflag [#allocation9], 1
    %534 = vsyncpa %s533, 1

</llo_original>
